<compile_context>
chip_gen: v7x
topology: tpu7x:2x2x1
jax: 0.10.0
libtpu: 0.0.40
codegen_flags: <defaults>
</compile_context>

<pallas_src>
import jax
import jax.numpy as jnp
from jax.experimental import pallas as pl
from jax.experimental.pallas import tpu as pltpu


def _attention_kernel(x_ref, q_ref, o_ref):
    """Un-packed path: x block (Bb, T, H), q (1, H), out (Bb, H)."""
    x = x_ref[...]                                        # input dtype
    q = q_ref[...]                                        # (1, H), broadcasts
    # Score dot: VPU multiply in the input dtype, f32 accumulation over H.
    scores = jnp.sum(x * q, axis=-1, dtype=jnp.float32)   # (Bb, T)
    # Numerically stable softmax over time; normalization deferred.
    m = jnp.max(scores, axis=-1, keepdims=True)           # (Bb, 1)
    e = jnp.exp(scores - m)                               # (Bb, T) f32
    denom = jnp.sum(e, axis=-1, keepdims=True)            # (Bb, 1)
    # Unnormalized context: big multiply in input dtype, f32 accumulation.
    ctx = jnp.sum(e.astype(x.dtype)[:, :, None] * x, axis=1,
                  dtype=jnp.float32)                      # (Bb, H)
    o_ref[...] = (ctx * pl.reciprocal(denom, approx=False)).astype(o_ref.dtype)


def _attention_kernel_packed(x_ref, q_ref, o_ref):
    """Lane-packed path for H < 128.

    The wrapper reshaped (B, T, H) -> (B, T//k, k*H) with k = 128 // H and
    tiled the query k times, so lane segment j of packed row tp holds time
    step t = tp*k + j.  Softmax over time and the time-sum are permutation
    invariant, so segments are reduced independently and combined.
    """
    x = x_ref[...]                                        # (Bb, Tp, k*H)
    q = q_ref[...]                                        # (1, k*H)
    bb = x.shape[0]
    h = o_ref.shape[-1]
    k = x.shape[-1] // h

    prod = x * q                                          # lane-dense multiply
    # Per-segment scores: f32 lane reduce over each H-chunk.
    scores = [jnp.sum(prod[:, :, j * h:(j + 1) * h], axis=-1,
                      dtype=jnp.float32) for j in range(k)]    # k x (Bb, Tp)
    m = scores[0].max(axis=-1, keepdims=True)
    for s in scores[1:]:
        m = jnp.maximum(m, s.max(axis=-1, keepdims=True))      # (Bb, 1)
    es = [jnp.exp(s - m) for s in scores]
    denom = es[0].sum(axis=-1, keepdims=True)
    for e in es[1:]:
        denom = denom + e.sum(axis=-1, keepdims=True)          # (Bb, 1)
    # Unnormalized context, accumulated per segment in f32.
    ctx = jnp.zeros((bb, h), jnp.float32)
    for j in range(k):
        xj = x[:, :, j * h:(j + 1) * h]                   # (Bb, Tp, H)
        ej = es[j].astype(x.dtype)[:, :, None]            # (Bb, Tp, 1)
        ctx = ctx + jnp.sum(ej * xj, axis=1, dtype=jnp.float32)
    o_ref[...] = (ctx * pl.reciprocal(denom, approx=False)).astype(o_ref.dtype)


def _choose_block_b(B, T, H, itemsize, target_block_bytes):
    """Batch block: ~target bytes per x block, sublane-aligned, grid-friendly."""
    align = 16 if itemsize < 4 else 8      # whole packed sublanes for 16-bit
    if B < align:
        return align                        # single (tail-padded) block
    row_bytes = max(1, T * H * itemsize)
    bb = max(align, (target_block_bytes // row_bytes) // align * align)
    # Full blocks never exceed B (the final edge block may be partial).
    bb = min(bb, (B // align) * align)
    # Keep >= 4 grid steps for large batches so the "parallel" axis can be
    # split across both v7x TensorCores.
    if B >= 4 * align:
        bb = min(bb, max(align, pl.cdiv(pl.cdiv(B, 4), align) * align))
    return int(bb)


def attention_forward(output, query, *, target_block_bytes=2 * 1024 * 1024):
    """output: (B, T, H), query: (H, 1) (PyTorch param layout) -> (B, H)."""
    B, T, H = output.shape
    assert query.shape == (H, 1)
    dtype = output.dtype
    itemsize = jnp.dtype(dtype).itemsize

    q_row = query.reshape(1, H).astype(dtype)

    # Lane repacking: with H < 128 only H of the 128 lanes would be live in
    # every load / VPU op and every (8,128) VMEM tile.  Fold k = 128 // H
    # consecutive time steps into the lane dim (free contiguous reshape).
    k = 1
    if H < 128 and 128 % H == 0 and T % (128 // H) == 0:
        k = 128 // H
    if k > 1:
        x_in = output.reshape(B, T // k, k * H)
        q_in = jnp.tile(q_row, (1, k))
        kernel = _attention_kernel_packed
    else:
        x_in = output
        q_in = q_row
        kernel = _attention_kernel
    _, Tb, Hb = x_in.shape

    Bb = _choose_block_b(B, T, H, itemsize, target_block_bytes)

    # Tiny tail-only pad, taken only when the whole batch is smaller than one
    # sublane-aligned block (a handful of rows; NOT a full-tensor pass).
    x_run, B_run = x_in, B
    if B < Bb:
        x_run = jnp.pad(x_in, ((0, Bb - B), (0, 0), (0, 0)))
        B_run = Bb

    grid = (pl.cdiv(B_run, Bb),)            # partial edge block handled by Pallas

    # Scoped-VMEM budget: double-buffered x block + out block + query + slack.
    in_block = Bb * Tb * Hb * itemsize
    out_block = Bb * H * itemsize
    vmem_limit = int(min(64 * 1024 * 1024,
                         max(8 * 1024 * 1024,
                             2 * (in_block + out_block + Hb * itemsize)
                             + (1 << 20))))

    cost = pl.CostEstimate(
        flops=4 * B * T * H,
        transcendentals=B * T,
        bytes_accessed=(B * T * H + B * H + H) * itemsize,
    )

    out = pl.pallas_call(
        kernel,
        out_shape=jax.ShapeDtypeStruct((B_run, H), dtype),
        grid_spec=pltpu.PrefetchScalarGridSpec(
            num_scalar_prefetch=0,
            grid=grid,
            in_specs=[
                pl.BlockSpec((Bb, Tb, Hb), lambda b: (b, 0, 0)),  # batch tile
                pl.BlockSpec((1, Hb), lambda b: (0, 0)),          # shared query
            ],
            out_specs=pl.BlockSpec((Bb, H), lambda b: (b, 0)),
        ),
        compiler_params=pltpu.CompilerParams(
            dimension_semantics=("parallel",),
            vmem_limit_bytes=vmem_limit,
        ),
        cost_estimate=cost,
    )(x_run, q_in)

    return out[:B]


def attention_reference(output, query):
    """Pure-JAX reference mirroring the PyTorch forward (f32 throughout)."""
    scores = jnp.matmul(output, query, precision=jax.lax.Precision.HIGHEST)
    w = jax.nn.softmax(scores.reshape(output.shape[0], -1), axis=1)   # (B, T)
    return jnp.sum(w[:, :, None] * output, axis=1)                    # (B, H)


def _check(B, T, H, seed, atol=1e-4, rtol=1e-4):
    key = jax.random.PRNGKey(seed)
    k_out, k_q = jax.random.split(key)
    output = jax.random.normal(k_out, (B, T, H), dtype=jnp.float32)
    query = jax.random.normal(k_q, (H, 1), dtype=jnp.float32) * 0.1
    result = jax.block_until_ready(attention_forward(output, query))
    ref = attention_reference(output, query)
    assert result.shape == (B, H)
    err = jnp.max(jnp.abs(result - ref))
    assert jnp.allclose(result, ref, atol=atol, rtol=rtol), (
        f"mismatch at B={B},T={T},H={H}: max abs err {err}")


if __name__ == "__main__":
    # Module-sized example (batch=2, seq=8, hidden=32): lane-packed path,
    # single (tail-padded) batch block.
    _check(B=2, T=8, H=32, seed=0)
    # Ragged multi-step batch, lane-packed path (last grid block is partial,
    # no full-tensor pad).
    _check(B=37, T=8, H=32, seed=1)
    # H >= 128: un-packed path with a partial final batch block.
    _check(B=12, T=16, H=128, seed=2)
    print("KERNEL_OK")
</pallas_src>

<mosaic_0001>
module attributes {stable_mosaic.version = 11 : i64} {
  func.func @_attention_kernel_packed(%arg0: i32, %arg1: memref<8x2x128xf32, #tpu.memory_space<vmem>>, %arg2: memref<1x128xf32, #tpu.memory_space<vmem>>, %arg3: memref<8x32xf32, #tpu.memory_space<vmem>>) attributes {dimension_semantics = [#tpu.dimension_semantics<parallel>], iteration_bounds = array<i64: 1>, scalar_prefetch = 0 : i64, scratch_operands = 0 : i64, tpu.core_type = #tpu.core_type<tc>, window_params = [{transform_indices = @transform_0, window_bounds = array<i64: 8, 2, 128>}, {pipeline_mode = #tpu.pipeline_mode<synchronous>, transform_indices = @transform_1, window_bounds = array<i64: 1, 128>}, {transform_indices = @transform_2, window_bounds = array<i64: 8, 32>}]} {
    %c0 = arith.constant 0 : index
    %c0_0 = arith.constant 0 : index
    %c0_1 = arith.constant 0 : index
    %0 = vector.load %arg1[%c0, %c0_0, %c0_1] : memref<8x2x128xf32, #tpu.memory_space<vmem>>, vector<8x2x128xf32>
    %c0_2 = arith.constant 0 : index
    %c0_3 = arith.constant 0 : index
    %1 = vector.load %arg2[%c0_2, %c0_3] : memref<1x128xf32, #tpu.memory_space<vmem>>, vector<1x128xf32>
    %2 = vector.shape_cast %1 : vector<1x128xf32> to vector<1x1x128xf32>
    %3 = vector.broadcast %2 : vector<1x1x128xf32> to vector<8x2x128xf32>
    %4 = arith.mulf %0, %3 : vector<8x2x128xf32>
    %5 = vector.extract_strided_slice %4 {offsets = [0, 0, 0], sizes = [8, 2, 32], strides = [1, 1, 1]} : vector<8x2x128xf32> to vector<8x2x32xf32>
    %cst = arith.constant dense<0.000000e+00> : vector<8x2xf32>
    %6 = vector.multi_reduction <add>, %5, %cst [2] : vector<8x2x32xf32> to vector<8x2xf32>
    %7 = vector.extract_strided_slice %4 {offsets = [0, 0, 32], sizes = [8, 2, 32], strides = [1, 1, 1]} : vector<8x2x128xf32> to vector<8x2x32xf32>
    %cst_4 = arith.constant dense<0.000000e+00> : vector<8x2xf32>
    %8 = vector.multi_reduction <add>, %7, %cst_4 [2] : vector<8x2x32xf32> to vector<8x2xf32>
    %9 = vector.extract_strided_slice %4 {offsets = [0, 0, 64], sizes = [8, 2, 32], strides = [1, 1, 1]} : vector<8x2x128xf32> to vector<8x2x32xf32>
    %cst_5 = arith.constant dense<0.000000e+00> : vector<8x2xf32>
    %10 = vector.multi_reduction <add>, %9, %cst_5 [2] : vector<8x2x32xf32> to vector<8x2xf32>
    %11 = vector.extract_strided_slice %4 {offsets = [0, 0, 96], sizes = [8, 2, 32], strides = [1, 1, 1]} : vector<8x2x128xf32> to vector<8x2x32xf32>
    %cst_6 = arith.constant dense<0.000000e+00> : vector<8x2xf32>
    %12 = vector.multi_reduction <add>, %11, %cst_6 [2] : vector<8x2x32xf32> to vector<8x2xf32>
    %cst_7 = arith.constant dense<0xFF800000> : vector<8xf32>
    %13 = vector.multi_reduction <maximumf>, %6, %cst_7 [1] : vector<8x2xf32> to vector<8xf32>
    %14 = vector.shape_cast %13 : vector<8xf32> to vector<8x1xf32>
    %cst_8 = arith.constant dense<0xFF800000> : vector<8xf32>
    %15 = vector.multi_reduction <maximumf>, %8, %cst_8 [1] : vector<8x2xf32> to vector<8xf32>
    %16 = vector.shape_cast %15 : vector<8xf32> to vector<8x1xf32>
    %17 = arith.maximumf %14, %16 : vector<8x1xf32>
    %cst_9 = arith.constant dense<0xFF800000> : vector<8xf32>
    %18 = vector.multi_reduction <maximumf>, %10, %cst_9 [1] : vector<8x2xf32> to vector<8xf32>
    %19 = vector.shape_cast %18 : vector<8xf32> to vector<8x1xf32>
    %20 = arith.maximumf %17, %19 : vector<8x1xf32>
    %cst_10 = arith.constant dense<0xFF800000> : vector<8xf32>
    %21 = vector.multi_reduction <maximumf>, %12, %cst_10 [1] : vector<8x2xf32> to vector<8xf32>
    %22 = vector.shape_cast %21 : vector<8xf32> to vector<8x1xf32>
    %23 = arith.maximumf %20, %22 : vector<8x1xf32>
    %24 = vector.broadcast %23 : vector<8x1xf32> to vector<8x2xf32>
    %25 = arith.subf %6, %24 : vector<8x2xf32>
    %26 = math.exp %25 : vector<8x2xf32>
    %27 = vector.broadcast %23 : vector<8x1xf32> to vector<8x2xf32>
    %28 = arith.subf %8, %27 : vector<8x2xf32>
    %29 = math.exp %28 : vector<8x2xf32>
    %30 = vector.broadcast %23 : vector<8x1xf32> to vector<8x2xf32>
    %31 = arith.subf %10, %30 : vector<8x2xf32>
    %32 = math.exp %31 : vector<8x2xf32>
    %33 = vector.broadcast %23 : vector<8x1xf32> to vector<8x2xf32>
    %34 = arith.subf %12, %33 : vector<8x2xf32>
    %35 = math.exp %34 : vector<8x2xf32>
    %cst_11 = arith.constant dense<0.000000e+00> : vector<8xf32>
    %36 = vector.multi_reduction <add>, %26, %cst_11 [1] : vector<8x2xf32> to vector<8xf32>
    %37 = vector.shape_cast %36 : vector<8xf32> to vector<8x1xf32>
    %cst_12 = arith.constant dense<0.000000e+00> : vector<8xf32>
    %38 = vector.multi_reduction <add>, %29, %cst_12 [1] : vector<8x2xf32> to vector<8xf32>
    %39 = vector.shape_cast %38 : vector<8xf32> to vector<8x1xf32>
    %40 = arith.addf %37, %39 : vector<8x1xf32>
    %cst_13 = arith.constant dense<0.000000e+00> : vector<8xf32>
    %41 = vector.multi_reduction <add>, %32, %cst_13 [1] : vector<8x2xf32> to vector<8xf32>
    %42 = vector.shape_cast %41 : vector<8xf32> to vector<8x1xf32>
    %43 = arith.addf %40, %42 : vector<8x1xf32>
    %cst_14 = arith.constant dense<0.000000e+00> : vector<8xf32>
    %44 = vector.multi_reduction <add>, %35, %cst_14 [1] : vector<8x2xf32> to vector<8xf32>
    %45 = vector.shape_cast %44 : vector<8xf32> to vector<8x1xf32>
    %46 = arith.addf %43, %45 : vector<8x1xf32>
    %cst_15 = arith.constant 0.000000e+00 : f32
    %47 = vector.broadcast %cst_15 : f32 to vector<8x32xf32>
    %48 = vector.extract_strided_slice %0 {offsets = [0, 0, 0], sizes = [8, 2, 32], strides = [1, 1, 1]} : vector<8x2x128xf32> to vector<8x2x32xf32>
    %49 = vector.shape_cast %26 : vector<8x2xf32> to vector<8x2x1xf32>
    %50 = vector.broadcast %49 : vector<8x2x1xf32> to vector<8x2x32xf32>
    %51 = arith.mulf %50, %48 : vector<8x2x32xf32>
    %cst_16 = arith.constant dense<0.000000e+00> : vector<8x32xf32>
    %52 = vector.multi_reduction <add>, %51, %cst_16 [1] : vector<8x2x32xf32> to vector<8x32xf32>
    %53 = arith.addf %47, %52 : vector<8x32xf32>
    %54 = vector.extract_strided_slice %0 {offsets = [0, 0, 32], sizes = [8, 2, 32], strides = [1, 1, 1]} : vector<8x2x128xf32> to vector<8x2x32xf32>
    %55 = vector.shape_cast %29 : vector<8x2xf32> to vector<8x2x1xf32>
    %56 = vector.broadcast %55 : vector<8x2x1xf32> to vector<8x2x32xf32>
    %57 = arith.mulf %56, %54 : vector<8x2x32xf32>
    %cst_17 = arith.constant dense<0.000000e+00> : vector<8x32xf32>
    %58 = vector.multi_reduction <add>, %57, %cst_17 [1] : vector<8x2x32xf32> to vector<8x32xf32>
    %59 = arith.addf %53, %58 : vector<8x32xf32>
    %60 = vector.extract_strided_slice %0 {offsets = [0, 0, 64], sizes = [8, 2, 32], strides = [1, 1, 1]} : vector<8x2x128xf32> to vector<8x2x32xf32>
    %61 = vector.shape_cast %32 : vector<8x2xf32> to vector<8x2x1xf32>
    %62 = vector.broadcast %61 : vector<8x2x1xf32> to vector<8x2x32xf32>
    %63 = arith.mulf %62, %60 : vector<8x2x32xf32>
    %cst_18 = arith.constant dense<0.000000e+00> : vector<8x32xf32>
    %64 = vector.multi_reduction <add>, %63, %cst_18 [1] : vector<8x2x32xf32> to vector<8x32xf32>
    %65 = arith.addf %59, %64 : vector<8x32xf32>
    %66 = vector.extract_strided_slice %0 {offsets = [0, 0, 96], sizes = [8, 2, 32], strides = [1, 1, 1]} : vector<8x2x128xf32> to vector<8x2x32xf32>
    %67 = vector.shape_cast %35 : vector<8x2xf32> to vector<8x2x1xf32>
    %68 = vector.broadcast %67 : vector<8x2x1xf32> to vector<8x2x32xf32>
    %69 = arith.mulf %68, %66 : vector<8x2x32xf32>
    %cst_19 = arith.constant dense<0.000000e+00> : vector<8x32xf32>
    %70 = vector.multi_reduction <add>, %69, %cst_19 [1] : vector<8x2x32xf32> to vector<8x32xf32>
    %71 = arith.addf %65, %70 : vector<8x32xf32>
    %72 = tpu.reciprocal %46 : vector<8x1xf32> -> vector<8x1xf32>
    %73 = vector.broadcast %72 : vector<8x1xf32> to vector<8x32xf32>
    %74 = arith.mulf %71, %73 : vector<8x32xf32>
    %c0_20 = arith.constant 0 : index
    %c0_21 = arith.constant 0 : index
    %75 = vector.load %arg3[%c0_20, %c0_21] : memref<8x32xf32, #tpu.memory_space<vmem>>, vector<8x32xf32>
    tpu.vector_store %arg3[%c0_20, %c0_21], %74 {strides = array<i32>} : memref<8x32xf32, #tpu.memory_space<vmem>>, vector<8x32xf32>,
    return
  }
  func.func @transform_0(%arg0: i32) -> (i32, i32, i32) {
    %c0_i32 = arith.constant 0 : i32
    %c0_i32_0 = arith.constant 0 : i32
    %c0_i32_1 = arith.constant 0 : i32
    return %arg0, %c0_i32, %c0_i32_0 : i32, i32, i32
  }
  func.func @transform_1(%arg0: i32) -> (i32, i32) {
    %c0_i32 = arith.constant 0 : i32
    %c0_i32_0 = arith.constant 0 : i32
    %c0_i32_1 = arith.constant 0 : i32
    return %c0_i32, %c0_i32_0 : i32, i32
  }
  func.func @transform_2(%arg0: i32) -> (i32, i32) {
    %c0_i32 = arith.constant 0 : i32
    %c0_i32_0 = arith.constant 0 : i32
    return %arg0, %c0_i32 : i32, i32
  }
}

</mosaic_0001>

<llo_original>
// kernel: tpu_custom_call.1
$region0: #{tpu_custom_call.1}
  #allocation0 [shape = 'u32[]', space=smem, size = 0x4, offset = 0x4, fixed_abs, tag = 'smem constant byte address 0x4 - core index']
  #allocation1 [shape = 'u32[144,128]{1,0:T(1,128)}', space=vmem, size = 0x12000, scoped, tag = 'internal scratch']
  %s0 = inlined_call_operand.hbm [shape: f32[8,2,128], index: 0, kind: input, shape index: {}]
  %s1 = inlined_call_operand.vmem [shape: f32[1,128], index: 1, kind: input, shape index: {}]
  %s2 = inlined_call_operand.hbm [shape: f32[8,32], index: 2, kind: output, shape index: {}]
  %s3 = sld [smem:[#allocation0]]
  $region22: #{tpu_custom_call.1} parent=0
    _
  %s5 = ssub.s32 1, %s3
  %s6 = scalar_select 0, %s5, %s3
  $region1: #{tpu_custom_call.1} parent=0
    #allocation2 [shape = 'u8[8192]{0}', space=vmem, size = 0x2000, scoped, tag = 'input window, operand 0, single buffered']
    #allocation3 [shape = 's32[1]{0}', space=sflag, size = 0x4, scoped, tag = 'scoped memory for tpu_custom_call.1']
    #allocation4 [shape = 's32[1]{0}', space=sflag, size = 0x4, scoped, tag = 'scoped memory for tpu_custom_call.1']
    #allocation5 [shape = 'u8[4096]{0}', space=vmem, size = 0x1000, scoped, tag = 'output window, operand 0, single buffered']
    %7 = vsyncpa [#allocation3], 0
    %8 = vsyncpa [#allocation4], 0
    // Predicated region
    $region2: #{tpu_custom_call.1} parent=1 // pred_check
      _
    $region3: #{tpu_custom_call.1} parent=1 // pred_check_branch
      %10 = sbr.rel (0) target = $region5
    $region4: #{tpu_custom_call.1} parent=1 // pred_region
      %s12 = ssub.s32 256, 256
      %13 = vsyncadd [#allocation3], %s12
      %s14 = sshll.u32 [#allocation2], 4
      %s15 = int_to_ptr.vmem [resolvable:$true] %s14
      %20 = dma.hbm_to_vmem [thread:$0]  %s0, 256, %s15, [#allocation3], 32, 32, 2
    $region5: #{tpu_custom_call.1} parent=1 // pred_fallthru
      _
    // Predicated region
    $region6: #{tpu_custom_call.1} parent=1 // pred_check
      _
    $region7: #{tpu_custom_call.1} parent=1 // pred_check_branch
      %22 = sbr.rel (0) target = $region9
    $region8: #{tpu_custom_call.1} parent=1 // pred_region
      _
    $region9: #{tpu_custom_call.1} parent=1 // pred_fallthru
      _
    // Predicated region
    $region10: #{tpu_custom_call.1} parent=1 // pred_check
      _
    $region11: #{tpu_custom_call.1} parent=1 // pred_check_branch
      %24 = sbr.rel (0) target = $region13
    $region12: #{tpu_custom_call.1} parent=1 // pred_region
      %25 = dma.done [#allocation3], 256
    $region13: #{tpu_custom_call.1} parent=1 // pred_fallthru
      _
    %v26 = vld [vmem:[#allocation2] sm:$0x3]
    %v27 = vld [vmem:[#allocation2 + $0x2] sm:$0x3]
    %v28 = vld [vmem:[#allocation2 + $0x4] sm:$0x3]
    %v29 = vld [vmem:[#allocation2 + $0x6] sm:$0x3]
    %v30 = vld [vmem:[#allocation2 + $0x8] sm:$0x3]
    %v31 = vld [vmem:[#allocation2 + $0xa] sm:$0x3]
    %v32 = vld [vmem:[#allocation2 + $0xc] sm:$0x3]
    %v33 = vld [vmem:[#allocation2 + $0xe] sm:$0x3]
    %v34 = vld [vmem:[%s1] sm:$0x1]
    %v36 = vlaneseq
    %v37 = vshrl.u32 %v36, 7
    %v38 = vsub.s32 0, %v37
    %v39 = vrot.slane %v34, %v38
    %v41 = vmul.f32 %v26, %v39
    %v42 = vmul.f32 %v27, %v39
    %v43 = vmul.f32 %v28, %v39
    %v44 = vmul.f32 %v29, %v39
    %v45 = vmul.f32 %v30, %v39
    %v46 = vmul.f32 %v31, %v39
    %v47 = vmul.f32 %v32, %v39
    %v48 = vmul.f32 %v33, %v39
    %vm49 = vcmask 254976
    %v50 = vsel %vm49, %v41, 0.0
    %51 = vadd.xlane.f32.xlu0 %v50
    %v52 = vpop.xlane.xlu0 %51
    %v53 = vsel %vm49, %v42, 0.0
    %54 = vadd.xlane.f32.xlu0 %v53
    %v55 = vpop.xlane.xlu0 %54
    %v56 = vsel %vm49, %v43, 0.0
    %57 = vadd.xlane.f32.xlu0 %v56
    %v58 = vpop.xlane.xlu0 %57
    %v59 = vsel %vm49, %v44, 0.0
    %60 = vadd.xlane.f32.xlu0 %v59
    %v61 = vpop.xlane.xlu0 %60
    %v62 = vsel %vm49, %v45, 0.0
    %63 = vadd.xlane.f32.xlu0 %v62
    %v64 = vpop.xlane.xlu0 %63
    %v65 = vsel %vm49, %v46, 0.0
    %66 = vadd.xlane.f32.xlu0 %v65
    %v67 = vpop.xlane.xlu0 %66
    %v68 = vsel %vm49, %v47, 0.0
    %69 = vadd.xlane.f32.xlu0 %v68
    %v70 = vpop.xlane.xlu0 %69
    %v71 = vsel %vm49, %v48, 0.0
    %72 = vadd.xlane.f32.xlu0 %v71
    %v73 = vpop.xlane.xlu0 %72
    %82 = vrot.lane.b32.xlu0 %v41, 96
    %v83 = vpop.permute.xlu0 %82
    %84 = vrot.lane.b32.xlu0 %v42, 96
    %v85 = vpop.permute.xlu0 %84
    %86 = vrot.lane.b32.xlu0 %v43, 96
    %v87 = vpop.permute.xlu0 %86
    %88 = vrot.lane.b32.xlu0 %v44, 96
    %v89 = vpop.permute.xlu0 %88
    %90 = vrot.lane.b32.xlu0 %v45, 96
    %v91 = vpop.permute.xlu0 %90
    %92 = vrot.lane.b32.xlu0 %v46, 96
    %v93 = vpop.permute.xlu0 %92
    %94 = vrot.lane.b32.xlu0 %v47, 96
    %v95 = vpop.permute.xlu0 %94
    %96 = vrot.lane.b32.xlu0 %v48, 96
    %v97 = vpop.permute.xlu0 %96
    %v106 = vsel %vm49, %v83, 0.0
    %107 = vadd.xlane.f32.xlu0 %v106
    %v108 = vpop.xlane.xlu0 %107
    %v109 = vsel %vm49, %v85, 0.0
    %110 = vadd.xlane.f32.xlu0 %v109
    %v111 = vpop.xlane.xlu0 %110
    %v112 = vsel %vm49, %v87, 0.0
    %113 = vadd.xlane.f32.xlu0 %v112
    %v114 = vpop.xlane.xlu0 %113
    %v115 = vsel %vm49, %v89, 0.0
    %116 = vadd.xlane.f32.xlu0 %v115
    %v117 = vpop.xlane.xlu0 %116
    %v118 = vsel %vm49, %v91, 0.0
    %119 = vadd.xlane.f32.xlu0 %v118
    %v120 = vpop.xlane.xlu0 %119
    %v121 = vsel %vm49, %v93, 0.0
    %122 = vadd.xlane.f32.xlu0 %v121
    %v123 = vpop.xlane.xlu0 %122
    %v124 = vsel %vm49, %v95, 0.0
    %125 = vadd.xlane.f32.xlu0 %v124
    %v126 = vpop.xlane.xlu0 %125
    %v127 = vsel %vm49, %v97, 0.0
    %128 = vadd.xlane.f32.xlu0 %v127
    %v129 = vpop.xlane.xlu0 %128
    %130 = vrot.lane.b32.xlu0 %v41, 64
    %v131 = vpop.permute.xlu0 %130
    %132 = vrot.lane.b32.xlu0 %v42, 64
    %v133 = vpop.permute.xlu0 %132
    %134 = vrot.lane.b32.xlu0 %v43, 64
    %v135 = vpop.permute.xlu0 %134
    %136 = vrot.lane.b32.xlu0 %v44, 64
    %v137 = vpop.permute.xlu0 %136
    %138 = vrot.lane.b32.xlu0 %v45, 64
    %v139 = vpop.permute.xlu0 %138
    %140 = vrot.lane.b32.xlu0 %v46, 64
    %v141 = vpop.permute.xlu0 %140
    %142 = vrot.lane.b32.xlu0 %v47, 64
    %v143 = vpop.permute.xlu0 %142
    %144 = vrot.lane.b32.xlu0 %v48, 64
    %v145 = vpop.permute.xlu0 %144
    %v154 = vsel %vm49, %v131, 0.0
    %155 = vadd.xlane.f32.xlu0 %v154
    %v156 = vpop.xlane.xlu0 %155
    %v157 = vsel %vm49, %v133, 0.0
    %158 = vadd.xlane.f32.xlu0 %v157
    %v159 = vpop.xlane.xlu0 %158
    %v160 = vsel %vm49, %v135, 0.0
    %161 = vadd.xlane.f32.xlu0 %v160
    %v162 = vpop.xlane.xlu0 %161
    %v163 = vsel %vm49, %v137, 0.0
    %164 = vadd.xlane.f32.xlu0 %v163
    %v165 = vpop.xlane.xlu0 %164
    %v166 = vsel %vm49, %v139, 0.0
    %167 = vadd.xlane.f32.xlu0 %v166
    %v168 = vpop.xlane.xlu0 %167
    %v169 = vsel %vm49, %v141, 0.0
    %170 = vadd.xlane.f32.xlu0 %v169
    %v171 = vpop.xlane.xlu0 %170
    %v172 = vsel %vm49, %v143, 0.0
    %173 = vadd.xlane.f32.xlu0 %v172
    %v174 = vpop.xlane.xlu0 %173
    %v175 = vsel %vm49, %v145, 0.0
    %176 = vadd.xlane.f32.xlu0 %v175
    %v177 = vpop.xlane.xlu0 %176
    %178 = vrot.lane.b32.xlu0 %v41, 32
    %v179 = vpop.permute.xlu0 %178
    %180 = vrot.lane.b32.xlu0 %v42, 32
    %v181 = vpop.permute.xlu0 %180
    %182 = vrot.lane.b32.xlu0 %v43, 32
    %v183 = vpop.permute.xlu0 %182
    %184 = vrot.lane.b32.xlu0 %v44, 32
    %v185 = vpop.permute.xlu0 %184
    %186 = vrot.lane.b32.xlu0 %v45, 32
    %v187 = vpop.permute.xlu0 %186
    %188 = vrot.lane.b32.xlu0 %v46, 32
    %v189 = vpop.permute.xlu0 %188
    %190 = vrot.lane.b32.xlu0 %v47, 32
    %v191 = vpop.permute.xlu0 %190
    %192 = vrot.lane.b32.xlu0 %v48, 32
    %v193 = vpop.permute.xlu0 %192
    %v202 = vsel %vm49, %v179, 0.0
    %203 = vadd.xlane.f32.xlu0 %v202
    %v204 = vpop.xlane.xlu0 %203
    %v205 = vsel %vm49, %v181, 0.0
    %206 = vadd.xlane.f32.xlu0 %v205
    %v207 = vpop.xlane.xlu0 %206
    %v208 = vsel %vm49, %v183, 0.0
    %209 = vadd.xlane.f32.xlu0 %v208
    %v210 = vpop.xlane.xlu0 %209
    %v211 = vsel %vm49, %v185, 0.0
    %212 = vadd.xlane.f32.xlu0 %v211
    %v213 = vpop.xlane.xlu0 %212
    %v214 = vsel %vm49, %v187, 0.0
    %215 = vadd.xlane.f32.xlu0 %v214
    %v216 = vpop.xlane.xlu0 %215
    %v217 = vsel %vm49, %v189, 0.0
    %218 = vadd.xlane.f32.xlu0 %v217
    %v219 = vpop.xlane.xlu0 %218
    %v220 = vsel %vm49, %v191, 0.0
    %221 = vadd.xlane.f32.xlu0 %v220
    %v222 = vpop.xlane.xlu0 %221
    %v223 = vsel %vm49, %v193, 0.0
    %224 = vadd.xlane.f32.xlu0 %v223
    %v225 = vpop.xlane.xlu0 %224
    %v234 = vlaneseq
    %v235 = vand.u32 %v234, 127
    %v236 = vlaneseq
    %v237 = vshrl.u32 %v236, 7
    %v238 = vsub.s32 %v235, %v237
    %v239 = vrot.slane %v52, %v238
    %v240 = vlaneseq
    %v241 = vshrl.u32 %v240, 7
    %v242 = vsub.s32 %v235, %v241
    %v243 = vrot.slane %v55, %v242
    %v244 = vlaneseq
    %v245 = vshrl.u32 %v244, 7
    %v246 = vsub.s32 %v235, %v245
    %v247 = vrot.slane %v58, %v246
    %v248 = vlaneseq
    %v249 = vshrl.u32 %v248, 7
    %v250 = vsub.s32 %v235, %v249
    %v251 = vrot.slane %v61, %v250
    %v252 = vlaneseq
    %v253 = vshrl.u32 %v252, 7
    %v254 = vsub.s32 %v235, %v253
    %v255 = vrot.slane %v64, %v254
    %v256 = vlaneseq
    %v257 = vshrl.u32 %v256, 7
    %v258 = vsub.s32 %v235, %v257
    %v259 = vrot.slane %v67, %v258
    %v260 = vlaneseq
    %v261 = vshrl.u32 %v260, 7
    %v262 = vsub.s32 %v235, %v261
    %v263 = vrot.slane %v70, %v262
    %v264 = vlaneseq
    %v265 = vshrl.u32 %v264, 7
    %v266 = vsub.s32 %v235, %v265
    %v267 = vrot.slane %v73, %v266
    %vm268 = vcmask 1041409
    %v269 = vsel %vm268, %v243, %v239
    %vm270 = vcmask 1042434
    %v271 = vsel %vm270, %v247, %v269
    %vm272 = vcmask 1043459
    %v273 = vsel %vm272, %v251, %v271
    %vm274 = vcmask 1044484
    %v275 = vsel %vm274, %v255, %v273
    %vm276 = vcmask 1045509
    %v277 = vsel %vm276, %v259, %v275
    %vm278 = vcmask 1046534
    %v279 = vsel %vm278, %v263, %v277
    %vm280 = vcmask 1047559
    %v281 = vsel %vm280, %v267, %v279
    %vm283 = vcmask 15360
    %v284 = vsel %vm283, %v281, -inf
    %285 = vmax.xlane.f32.xlu0 %v284
    %v286 = vpop.xlane.xlu0 %285
    %v295 = vlaneseq
    %v296 = vshrl.u32 %v295, 7
    %v297 = vsub.s32 %v235, %v296
    %v298 = vrot.slane %v108, %v297
    %v299 = vlaneseq
    %v300 = vshrl.u32 %v299, 7
    %v301 = vsub.s32 %v235, %v300
    %v302 = vrot.slane %v111, %v301
    %v303 = vlaneseq
    %v304 = vshrl.u32 %v303, 7
    %v305 = vsub.s32 %v235, %v304
    %v306 = vrot.slane %v114, %v305
    %v307 = vlaneseq
    %v308 = vshrl.u32 %v307, 7
    %v309 = vsub.s32 %v235, %v308
    %v310 = vrot.slane %v117, %v309
    %v311 = vlaneseq
    %v312 = vshrl.u32 %v311, 7
    %v313 = vsub.s32 %v235, %v312
    %v314 = vrot.slane %v120, %v313
    %v315 = vlaneseq
    %v316 = vshrl.u32 %v315, 7
    %v317 = vsub.s32 %v235, %v316
    %v318 = vrot.slane %v123, %v317
    %v319 = vlaneseq
    %v320 = vshrl.u32 %v319, 7
    %v321 = vsub.s32 %v235, %v320
    %v322 = vrot.slane %v126, %v321
    %v323 = vlaneseq
    %v324 = vshrl.u32 %v323, 7
    %v325 = vsub.s32 %v235, %v324
    %v326 = vrot.slane %v129, %v325
    %v327 = vsel %vm268, %v302, %v298
    %v328 = vsel %vm270, %v306, %v327
    %v329 = vsel %vm272, %v310, %v328
    %v330 = vsel %vm274, %v314, %v329
    %v331 = vsel %vm276, %v318, %v330
    %v332 = vsel %vm278, %v322, %v331
    %v333 = vsel %vm280, %v326, %v332
    %v335 = vsel %vm283, %v333, -inf
    %336 = vmax.xlane.f32.xlu0 %v335
    %v337 = vpop.xlane.xlu0 %336
    %v338 = vmax.f32 %v286, %v337
    %v347 = vlaneseq
    %v348 = vshrl.u32 %v347, 7
    %v349 = vsub.s32 %v235, %v348
    %v350 = vrot.slane %v156, %v349
    %v351 = vlaneseq
    %v352 = vshrl.u32 %v351, 7
    %v353 = vsub.s32 %v235, %v352
    %v354 = vrot.slane %v159, %v353
    %v355 = vlaneseq
    %v356 = vshrl.u32 %v355, 7
    %v357 = vsub.s32 %v235, %v356
    %v358 = vrot.slane %v162, %v357
    %v359 = vlaneseq
    %v360 = vshrl.u32 %v359, 7
    %v361 = vsub.s32 %v235, %v360
    %v362 = vrot.slane %v165, %v361
    %v363 = vlaneseq
    %v364 = vshrl.u32 %v363, 7
    %v365 = vsub.s32 %v235, %v364
    %v366 = vrot.slane %v168, %v365
    %v367 = vlaneseq
    %v368 = vshrl.u32 %v367, 7
    %v369 = vsub.s32 %v235, %v368
    %v370 = vrot.slane %v171, %v369
    %v371 = vlaneseq
    %v372 = vshrl.u32 %v371, 7
    %v373 = vsub.s32 %v235, %v372
    %v374 = vrot.slane %v174, %v373
    %v375 = vlaneseq
    %v376 = vshrl.u32 %v375, 7
    %v377 = vsub.s32 %v235, %v376
    %v378 = vrot.slane %v177, %v377
    %v379 = vsel %vm268, %v354, %v350
    %v380 = vsel %vm270, %v358, %v379
    %v381 = vsel %vm272, %v362, %v380
    %v382 = vsel %vm274, %v366, %v381
    %v383 = vsel %vm276, %v370, %v382
    %v384 = vsel %vm278, %v374, %v383
    %v385 = vsel %vm280, %v378, %v384
    %v387 = vsel %vm283, %v385, -inf
    %388 = vmax.xlane.f32.xlu0 %v387
    %v389 = vpop.xlane.xlu0 %388
    %v390 = vmax.f32 %v338, %v389
    %v399 = vlaneseq
    %v400 = vshrl.u32 %v399, 7
    %v401 = vsub.s32 %v235, %v400
    %v402 = vrot.slane %v204, %v401
    %v403 = vlaneseq
    %v404 = vshrl.u32 %v403, 7
    %v405 = vsub.s32 %v235, %v404
    %v406 = vrot.slane %v207, %v405
    %v407 = vlaneseq
    %v408 = vshrl.u32 %v407, 7
    %v409 = vsub.s32 %v235, %v408
    %v410 = vrot.slane %v210, %v409
    %v411 = vlaneseq
    %v412 = vshrl.u32 %v411, 7
    %v413 = vsub.s32 %v235, %v412
    %v414 = vrot.slane %v213, %v413
    %v415 = vlaneseq
    %v416 = vshrl.u32 %v415, 7
    %v417 = vsub.s32 %v235, %v416
    %v418 = vrot.slane %v216, %v417
    %v419 = vlaneseq
    %v420 = vshrl.u32 %v419, 7
    %v421 = vsub.s32 %v235, %v420
    %v422 = vrot.slane %v219, %v421
    %v423 = vlaneseq
    %v424 = vshrl.u32 %v423, 7
    %v425 = vsub.s32 %v235, %v424
    %v426 = vrot.slane %v222, %v425
    %v427 = vlaneseq
    %v428 = vshrl.u32 %v427, 7
    %v429 = vsub.s32 %v235, %v428
    %v430 = vrot.slane %v225, %v429
    %v431 = vsel %vm268, %v406, %v402
    %v432 = vsel %vm270, %v410, %v431
    %v433 = vsel %vm272, %v414, %v432
    %v434 = vsel %vm274, %v418, %v433
    %v435 = vsel %vm276, %v422, %v434
    %v436 = vsel %vm278, %v426, %v435
    %v437 = vsel %vm280, %v430, %v436
    %v439 = vsel %vm283, %v437, -inf
    %440 = vmax.xlane.f32.xlu0 %v439
    %v441 = vpop.xlane.xlu0 %440
    %v442 = vmax.f32 %v390, %v441
    %v444 = vlaneseq
    %v445 = vshrl.u32 %v444, 7
    %v446 = vsub.s32 0, %v445
    %v447 = vrot.slane %v442, %v446
    %v448 = vlaneseq
    %v449 = vshrl.u32 %v448, 7
    %v450 = vsub.s32 1, %v449
    %v451 = vrot.slane %v442, %v450
    %v452 = vlaneseq
    %v453 = vshrl.u32 %v452, 7
    %v454 = vsub.s32 2, %v453
    %v455 = vrot.slane %v442, %v454
    %v456 = vlaneseq
    %v457 = vshrl.u32 %v456, 7
    %v458 = vsub.s32 3, %v457
    %v459 = vrot.slane %v442, %v458
    %v460 = vlaneseq
    %v461 = vshrl.u32 %v460, 7
    %v462 = vsub.s32 4, %v461
    %v463 = vrot.slane %v442, %v462
    %v464 = vlaneseq
    %v465 = vshrl.u32 %v464, 7
    %v466 = vsub.s32 5, %v465
    %v467 = vrot.slane %v442, %v466
    %v468 = vlaneseq
    %v469 = vshrl.u32 %v468, 7
    %v470 = vsub.s32 6, %v469
    %v471 = vrot.slane %v442, %v470
    %v472 = vlaneseq
    %v473 = vshrl.u32 %v472, 7
    %v474 = vsub.s32 7, %v473
    %v475 = vrot.slane %v442, %v474
    %v484 = vsub.f32 %v52, %v447
    %v485 = vsub.f32 %v55, %v451
    %v486 = vsub.f32 %v58, %v455
    %v487 = vsub.f32 %v61, %v459
    %v488 = vsub.f32 %v64, %v463
    %v489 = vsub.f32 %v67, %v467
    %v490 = vsub.f32 %v70, %v471
    %v491 = vsub.f32 %v73, %v475
    %v492 = vmul.f32 %v484, 1.442695
    %v493 = vpow.pop %v492
    %v494 = vmul.f32 %v485, 1.442695
    %v495 = vpow.pop %v494
    %v496 = vmul.f32 %v486, 1.442695
    %v497 = vpow.pop %v496
    %v498 = vmul.f32 %v487, 1.442695
    %v499 = vpow.pop %v498
    %v500 = vmul.f32 %v488, 1.442695
    %v501 = vpow.pop %v500
    %v502 = vmul.f32 %v489, 1.442695
    %v503 = vpow.pop %v502
    %v504 = vmul.f32 %v490, 1.442695
    %v505 = vpow.pop %v504
    %v506 = vmul.f32 %v491, 1.442695
    %v507 = vpow.pop %v506
    %v508 = vsub.f32 %v108, %v447
    %v509 = vsub.f32 %v111, %v451
    %v510 = vsub.f32 %v114, %v455
    %v511 = vsub.f32 %v117, %v459
    %v512 = vsub.f32 %v120, %v463
    %v513 = vsub.f32 %v123, %v467
    %v514 = vsub.f32 %v126, %v471
    %v515 = vsub.f32 %v129, %v475
    %v516 = vmul.f32 %v508, 1.442695
    %v517 = vpow.pop %v516
    %v518 = vmul.f32 %v509, 1.442695
    %v519 = vpow.pop %v518
    %v520 = vmul.f32 %v510, 1.442695
    %v521 = vpow.pop %v520
    %v522 = vmul.f32 %v511, 1.442695
    %v523 = vpow.pop %v522
    %v524 = vmul.f32 %v512, 1.442695
    %v525 = vpow.pop %v524
    %v526 = vmul.f32 %v513, 1.442695
    %v527 = vpow.pop %v526
    %v528 = vmul.f32 %v514, 1.442695
    %v529 = vpow.pop %v528
    %v530 = vmul.f32 %v515, 1.442695
    %v531 = vpow.pop %v530
    %v532 = vsub.f32 %v156, %v447
    %v533 = vsub.f32 %v159, %v451
    %v534 = vsub.f32 %v162, %v455
    %v535 = vsub.f32 %v165, %v459
    %v536 = vsub.f32 %v168, %v463
    %v537 = vsub.f32 %v171, %v467
    %v538 = vsub.f32 %v174, %v471
    %v539 = vsub.f32 %v177, %v475
    %v540 = vmul.f32 %v532, 1.442695
    %v541 = vpow.pop %v540
    %v542 = vmul.f32 %v533, 1.442695
    %v543 = vpow.pop %v542
    %v544 = vmul.f32 %v534, 1.442695
    %v545 = vpow.pop %v544
    %v546 = vmul.f32 %v535, 1.442695
    %v547 = vpow.pop %v546
    %v548 = vmul.f32 %v536, 1.442695
    %v549 = vpow.pop %v548
    %v550 = vmul.f32 %v537, 1.442695
    %v551 = vpow.pop %v550
    %v552 = vmul.f32 %v538, 1.442695
    %v553 = vpow.pop %v552
    %v554 = vmul.f32 %v539, 1.442695
    %v555 = vpow.pop %v554
    %v556 = vsub.f32 %v204, %v447
    %v557 = vsub.f32 %v207, %v451
    %v558 = vsub.f32 %v210, %v455
    %v559 = vsub.f32 %v213, %v459
    %v560 = vsub.f32 %v216, %v463
    %v561 = vsub.f32 %v219, %v467
    %v562 = vsub.f32 %v222, %v471
    %v563 = vsub.f32 %v225, %v475
    %v564 = vmul.f32 %v556, 1.442695
    %v565 = vpow.pop %v564
    %v566 = vmul.f32 %v557, 1.442695
    %v567 = vpow.pop %v566
    %v568 = vmul.f32 %v558, 1.442695
    %v569 = vpow.pop %v568
    %v570 = vmul.f32 %v559, 1.442695
    %v571 = vpow.pop %v570
    %v572 = vmul.f32 %v560, 1.442695
    %v573 = vpow.pop %v572
    %v574 = vmul.f32 %v561, 1.442695
    %v575 = vpow.pop %v574
    %v576 = vmul.f32 %v562, 1.442695
    %v577 = vpow.pop %v576
    %v578 = vmul.f32 %v563, 1.442695
    %v579 = vpow.pop %v578
    %588 = vset.pattern.permute.xlu0 0
    %589 = vperm.xlu0 %588, %v493
    %v590 = vpop.permute.xlu0 %589
    %591 = vset.pattern.permute.xlu0 0
    %592 = vperm.xlu0 %591, %v495
    %v593 = vpop.permute.xlu0 %592
    %594 = vset.pattern.permute.xlu0 0
    %595 = vperm.xlu0 %594, %v497
    %v596 = vpop.permute.xlu0 %595
    %597 = vset.pattern.permute.xlu0 0
    %598 = vperm.xlu0 %597, %v499
    %v599 = vpop.permute.xlu0 %598
    %600 = vset.pattern.permute.xlu0 0
    %601 = vperm.xlu0 %600, %v501
    %v602 = vpop.permute.xlu0 %601
    %603 = vset.pattern.permute.xlu0 0
    %604 = vperm.xlu0 %603, %v503
    %v605 = vpop.permute.xlu0 %604
    %606 = vset.pattern.permute.xlu0 0
    %607 = vperm.xlu0 %606, %v505
    %v608 = vpop.permute.xlu0 %607
    %609 = vset.pattern.permute.xlu0 0
    %610 = vperm.xlu0 %609, %v507
    %v611 = vpop.permute.xlu0 %610
    %v612 = vlaneseq
    %v613 = vshrl.u32 %v612, 7
    %v614 = vsub.s32 %v235, %v613
    %v615 = vrot.slane %v590, %v614
    %v616 = vlaneseq
    %v617 = vshrl.u32 %v616, 7
    %v618 = vsub.s32 %v235, %v617
    %v619 = vrot.slane %v593, %v618
    %v620 = vlaneseq
    %v621 = vshrl.u32 %v620, 7
    %v622 = vsub.s32 %v235, %v621
    %v623 = vrot.slane %v596, %v622
    %v624 = vlaneseq
    %v625 = vshrl.u32 %v624, 7
    %v626 = vsub.s32 %v235, %v625
    %v627 = vrot.slane %v599, %v626
    %v628 = vlaneseq
    %v629 = vshrl.u32 %v628, 7
    %v630 = vsub.s32 %v235, %v629
    %v631 = vrot.slane %v602, %v630
    %v632 = vlaneseq
    %v633 = vshrl.u32 %v632, 7
    %v634 = vsub.s32 %v235, %v633
    %v635 = vrot.slane %v605, %v634
    %v636 = vlaneseq
    %v637 = vshrl.u32 %v636, 7
    %v638 = vsub.s32 %v235, %v637
    %v639 = vrot.slane %v608, %v638
    %v640 = vlaneseq
    %v641 = vshrl.u32 %v640, 7
    %v642 = vsub.s32 %v235, %v641
    %v643 = vrot.slane %v611, %v642
    %v644 = vsel %vm268, %v619, %v615
    %v645 = vsel %vm270, %v623, %v644
    %v646 = vsel %vm272, %v627, %v645
    %v647 = vsel %vm274, %v631, %v646
    %v648 = vsel %vm276, %v635, %v647
    %v649 = vsel %vm278, %v639, %v648
    %v650 = vsel %vm280, %v643, %v649
    %v652 = vsel %vm283, %v650, 0.0
    %653 = vadd.xlane.f32.xlu0 %v652
    %v654 = vpop.xlane.xlu0 %653
    %663 = vset.pattern.permute.xlu0 0
    %664 = vperm.xlu0 %663, %v517
    %v665 = vpop.permute.xlu0 %664
    %666 = vset.pattern.permute.xlu0 0
    %667 = vperm.xlu0 %666, %v519
    %v668 = vpop.permute.xlu0 %667
    %669 = vset.pattern.permute.xlu0 0
    %670 = vperm.xlu0 %669, %v521
    %v671 = vpop.permute.xlu0 %670
    %672 = vset.pattern.permute.xlu0 0
    %673 = vperm.xlu0 %672, %v523
    %v674 = vpop.permute.xlu0 %673
    %675 = vset.pattern.permute.xlu0 0
    %676 = vperm.xlu0 %675, %v525
    %v677 = vpop.permute.xlu0 %676
    %678 = vset.pattern.permute.xlu0 0
    %679 = vperm.xlu0 %678, %v527
    %v680 = vpop.permute.xlu0 %679
    %681 = vset.pattern.permute.xlu0 0
    %682 = vperm.xlu0 %681, %v529
    %v683 = vpop.permute.xlu0 %682
    %684 = vset.pattern.permute.xlu0 0
    %685 = vperm.xlu0 %684, %v531
    %v686 = vpop.permute.xlu0 %685
    %v687 = vlaneseq
    %v688 = vshrl.u32 %v687, 7
    %v689 = vsub.s32 %v235, %v688
    %v690 = vrot.slane %v665, %v689
    %v691 = vlaneseq
    %v692 = vshrl.u32 %v691, 7
    %v693 = vsub.s32 %v235, %v692
    %v694 = vrot.slane %v668, %v693
    %v695 = vlaneseq
    %v696 = vshrl.u32 %v695, 7
    %v697 = vsub.s32 %v235, %v696
    %v698 = vrot.slane %v671, %v697
    %v699 = vlaneseq
    %v700 = vshrl.u32 %v699, 7
    %v701 = vsub.s32 %v235, %v700
    %v702 = vrot.slane %v674, %v701
    %v703 = vlaneseq
    %v704 = vshrl.u32 %v703, 7
    %v705 = vsub.s32 %v235, %v704
    %v706 = vrot.slane %v677, %v705
    %v707 = vlaneseq
    %v708 = vshrl.u32 %v707, 7
    %v709 = vsub.s32 %v235, %v708
    %v710 = vrot.slane %v680, %v709
    %v711 = vlaneseq
    %v712 = vshrl.u32 %v711, 7
    %v713 = vsub.s32 %v235, %v712
    %v714 = vrot.slane %v683, %v713
    %v715 = vlaneseq
    %v716 = vshrl.u32 %v715, 7
    %v717 = vsub.s32 %v235, %v716
    %v718 = vrot.slane %v686, %v717
    %v719 = vsel %vm268, %v694, %v690
    %v720 = vsel %vm270, %v698, %v719
    %v721 = vsel %vm272, %v702, %v720
    %v722 = vsel %vm274, %v706, %v721
    %v723 = vsel %vm276, %v710, %v722
    %v724 = vsel %vm278, %v714, %v723
    %v725 = vsel %vm280, %v718, %v724
    %v727 = vsel %vm283, %v725, 0.0
    %728 = vadd.xlane.f32.xlu0 %v727
    %v729 = vpop.xlane.xlu0 %728
    %v730 = vadd.f32 %v654, %v729
    %739 = vset.pattern.permute.xlu0 0
    %740 = vperm.xlu0 %739, %v541
    %v741 = vpop.permute.xlu0 %740
    %742 = vset.pattern.permute.xlu0 0
    %743 = vperm.xlu0 %742, %v543
    %v744 = vpop.permute.xlu0 %743
    %745 = vset.pattern.permute.xlu0 0
    %746 = vperm.xlu0 %745, %v545
    %v747 = vpop.permute.xlu0 %746
    %748 = vset.pattern.permute.xlu0 0
    %749 = vperm.xlu0 %748, %v547
    %v750 = vpop.permute.xlu0 %749
    %751 = vset.pattern.permute.xlu0 0
    %752 = vperm.xlu0 %751, %v549
    %v753 = vpop.permute.xlu0 %752
    %754 = vset.pattern.permute.xlu0 0
    %755 = vperm.xlu0 %754, %v551
    %v756 = vpop.permute.xlu0 %755
    %757 = vset.pattern.permute.xlu0 0
    %758 = vperm.xlu0 %757, %v553
    %v759 = vpop.permute.xlu0 %758
    %760 = vset.pattern.permute.xlu0 0
    %761 = vperm.xlu0 %760, %v555
    %v762 = vpop.permute.xlu0 %761
    %v763 = vlaneseq
    %v764 = vshrl.u32 %v763, 7
    %v765 = vsub.s32 %v235, %v764
    %v766 = vrot.slane %v741, %v765
    %v767 = vlaneseq
    %v768 = vshrl.u32 %v767, 7
    %v769 = vsub.s32 %v235, %v768
    %v770 = vrot.slane %v744, %v769
    %v771 = vlaneseq
    %v772 = vshrl.u32 %v771, 7
    %v773 = vsub.s32 %v235, %v772
    %v774 = vrot.slane %v747, %v773
    %v775 = vlaneseq
    %v776 = vshrl.u32 %v775, 7
    %v777 = vsub.s32 %v235, %v776
    %v778 = vrot.slane %v750, %v777
    %v779 = vlaneseq
    %v780 = vshrl.u32 %v779, 7
    %v781 = vsub.s32 %v235, %v780
    %v782 = vrot.slane %v753, %v781
    %v783 = vlaneseq
    %v784 = vshrl.u32 %v783, 7
    %v785 = vsub.s32 %v235, %v784
    %v786 = vrot.slane %v756, %v785
    %v787 = vlaneseq
    %v788 = vshrl.u32 %v787, 7
    %v789 = vsub.s32 %v235, %v788
    %v790 = vrot.slane %v759, %v789
    %v791 = vlaneseq
    %v792 = vshrl.u32 %v791, 7
    %v793 = vsub.s32 %v235, %v792
    %v794 = vrot.slane %v762, %v793
    %v795 = vsel %vm268, %v770, %v766
    %v796 = vsel %vm270, %v774, %v795
    %v797 = vsel %vm272, %v778, %v796
    %v798 = vsel %vm274, %v782, %v797
    %v799 = vsel %vm276, %v786, %v798
    %v800 = vsel %vm278, %v790, %v799
    %v801 = vsel %vm280, %v794, %v800
    %v803 = vsel %vm283, %v801, 0.0
    %804 = vadd.xlane.f32.xlu0 %v803
    %v805 = vpop.xlane.xlu0 %804
    %v806 = vadd.f32 %v730, %v805
    %815 = vset.pattern.permute.xlu0 0
    %816 = vperm.xlu0 %815, %v565
    %v817 = vpop.permute.xlu0 %816
    %818 = vset.pattern.permute.xlu0 0
    %819 = vperm.xlu0 %818, %v567
    %v820 = vpop.permute.xlu0 %819
    %821 = vset.pattern.permute.xlu0 0
    %822 = vperm.xlu0 %821, %v569
    %v823 = vpop.permute.xlu0 %822
    %824 = vset.pattern.permute.xlu0 0
    %825 = vperm.xlu0 %824, %v571
    %v826 = vpop.permute.xlu0 %825
    %827 = vset.pattern.permute.xlu0 0
    %828 = vperm.xlu0 %827, %v573
    %v829 = vpop.permute.xlu0 %828
    %830 = vset.pattern.permute.xlu0 0
    %831 = vperm.xlu0 %830, %v575
    %v832 = vpop.permute.xlu0 %831
    %833 = vset.pattern.permute.xlu0 0
    %834 = vperm.xlu0 %833, %v577
    %v835 = vpop.permute.xlu0 %834
    %836 = vset.pattern.permute.xlu0 0
    %837 = vperm.xlu0 %836, %v579
    %v838 = vpop.permute.xlu0 %837
    %v839 = vlaneseq
    %v840 = vshrl.u32 %v839, 7
    %v841 = vsub.s32 %v235, %v840
    %v842 = vrot.slane %v817, %v841
    %v843 = vlaneseq
    %v844 = vshrl.u32 %v843, 7
    %v845 = vsub.s32 %v235, %v844
    %v846 = vrot.slane %v820, %v845
    %v847 = vlaneseq
    %v848 = vshrl.u32 %v847, 7
    %v849 = vsub.s32 %v235, %v848
    %v850 = vrot.slane %v823, %v849
    %v851 = vlaneseq
    %v852 = vshrl.u32 %v851, 7
    %v853 = vsub.s32 %v235, %v852
    %v854 = vrot.slane %v826, %v853
    %v855 = vlaneseq
    %v856 = vshrl.u32 %v855, 7
    %v857 = vsub.s32 %v235, %v856
    %v858 = vrot.slane %v829, %v857
    %v859 = vlaneseq
    %v860 = vshrl.u32 %v859, 7
    %v861 = vsub.s32 %v235, %v860
    %v862 = vrot.slane %v832, %v861
    %v863 = vlaneseq
    %v864 = vshrl.u32 %v863, 7
    %v865 = vsub.s32 %v235, %v864
    %v866 = vrot.slane %v835, %v865
    %v867 = vlaneseq
    %v868 = vshrl.u32 %v867, 7
    %v869 = vsub.s32 %v235, %v868
    %v870 = vrot.slane %v838, %v869
    %v871 = vsel %vm268, %v846, %v842
    %v872 = vsel %vm270, %v850, %v871
    %v873 = vsel %vm272, %v854, %v872
    %v874 = vsel %vm274, %v858, %v873
    %v875 = vsel %vm276, %v862, %v874
    %v876 = vsel %vm278, %v866, %v875
    %v877 = vsel %vm280, %v870, %v876
    %v879 = vsel %vm283, %v877, 0.0
    %880 = vadd.xlane.f32.xlu0 %v879
    %v881 = vpop.xlane.xlu0 %880
    %v882 = vadd.f32 %v806, %v881
    %v891 = vmul.f32 %v590, %v26
    %v892 = vmul.f32 %v593, %v27
    %v893 = vmul.f32 %v596, %v28
    %v894 = vmul.f32 %v599, %v29
    %v895 = vmul.f32 %v602, %v30
    %v896 = vmul.f32 %v605, %v31
    %v897 = vmul.f32 %v608, %v32
    %v898 = vmul.f32 %v611, %v33
    %v899 = vsel %vm49, %v891, 0.0
    %v900 = vrot.slane %v899, 4
    %v901 = vadd.f32 %v899, %v900
    %v902 = vrot.slane %v901, 2
    %v903 = vadd.f32 %v901, %v902
    %v904 = vrot.slane %v903, 1
    %v905 = vadd.f32 %v903, %v904
    %v906 = vsel %vm49, %v892, 0.0
    %v907 = vrot.slane %v906, 4
    %v908 = vadd.f32 %v906, %v907
    %v909 = vrot.slane %v908, 2
    %v910 = vadd.f32 %v908, %v909
    %v911 = vrot.slane %v910, 1
    %v912 = vadd.f32 %v910, %v911
    %v913 = vsel %vm49, %v893, 0.0
    %v914 = vrot.slane %v913, 4
    %v915 = vadd.f32 %v913, %v914
    %v916 = vrot.slane %v915, 2
    %v917 = vadd.f32 %v915, %v916
    %v918 = vrot.slane %v917, 1
    %v919 = vadd.f32 %v917, %v918
    %v920 = vsel %vm49, %v894, 0.0
    %v921 = vrot.slane %v920, 4
    %v922 = vadd.f32 %v920, %v921
    %v923 = vrot.slane %v922, 2
    %v924 = vadd.f32 %v922, %v923
    %v925 = vrot.slane %v924, 1
    %v926 = vadd.f32 %v924, %v925
    %v927 = vsel %vm49, %v895, 0.0
    %v928 = vrot.slane %v927, 4
    %v929 = vadd.f32 %v927, %v928
    %v930 = vrot.slane %v929, 2
    %v931 = vadd.f32 %v929, %v930
    %v932 = vrot.slane %v931, 1
    %v933 = vadd.f32 %v931, %v932
    %v934 = vsel %vm49, %v896, 0.0
    %v935 = vrot.slane %v934, 4
    %v936 = vadd.f32 %v934, %v935
    %v937 = vrot.slane %v936, 2
    %v938 = vadd.f32 %v936, %v937
    %v939 = vrot.slane %v938, 1
    %v940 = vadd.f32 %v938, %v939
    %v941 = vsel %vm49, %v897, 0.0
    %v942 = vrot.slane %v941, 4
    %v943 = vadd.f32 %v941, %v942
    %v944 = vrot.slane %v943, 2
    %v945 = vadd.f32 %v943, %v944
    %v946 = vrot.slane %v945, 1
    %v947 = vadd.f32 %v945, %v946
    %v948 = vsel %vm49, %v898, 0.0
    %v949 = vrot.slane %v948, 4
    %v950 = vadd.f32 %v948, %v949
    %v951 = vrot.slane %v950, 2
    %v952 = vadd.f32 %v950, %v951
    %v953 = vrot.slane %v952, 1
    %v954 = vadd.f32 %v952, %v953
    %v955 = vadd.f32 %v905, 0.0
    %v956 = vadd.f32 %v912, 0.0
    %v957 = vadd.f32 %v919, 0.0
    %v958 = vadd.f32 %v926, 0.0
    %v959 = vadd.f32 %v933, 0.0
    %v960 = vadd.f32 %v940, 0.0
    %v961 = vadd.f32 %v947, 0.0
    %v962 = vadd.f32 %v954, 0.0
    %v971 = vmul.f32 %v665, %v26
    %v972 = vmul.f32 %v668, %v27
    %v973 = vmul.f32 %v671, %v28
    %v974 = vmul.f32 %v674, %v29
    %v975 = vmul.f32 %v677, %v30
    %v976 = vmul.f32 %v680, %v31
    %v977 = vmul.f32 %v683, %v32
    %v978 = vmul.f32 %v686, %v33
    %vm979 = vcmask 517376
    %v980 = vsel %vm979, %v971, 0.0
    %v981 = vrot.slane %v980, 4
    %v982 = vadd.f32 %v980, %v981
    %v983 = vrot.slane %v982, 2
    %v984 = vadd.f32 %v982, %v983
    %v985 = vrot.slane %v984, 1
    %v986 = vadd.f32 %v984, %v985
    %v987 = vsel %vm979, %v972, 0.0
    %v988 = vrot.slane %v987, 4
    %v989 = vadd.f32 %v987, %v988
    %v990 = vrot.slane %v989, 2
    %v991 = vadd.f32 %v989, %v990
    %v992 = vrot.slane %v991, 1
    %v993 = vadd.f32 %v991, %v992
    %v994 = vsel %vm979, %v973, 0.0
    %v995 = vrot.slane %v994, 4
    %v996 = vadd.f32 %v994, %v995
    %v997 = vrot.slane %v996, 2
    %v998 = vadd.f32 %v996, %v997
    %v999 = vrot.slane %v998, 1
    %v1000 = vadd.f32 %v998, %v999
    %v1001 = vsel %vm979, %v974, 0.0
    %v1002 = vrot.slane %v1001, 4
    %v1003 = vadd.f32 %v1001, %v1002
    %v1004 = vrot.slane %v1003, 2
    %v1005 = vadd.f32 %v1003, %v1004
    %v1006 = vrot.slane %v1005, 1
    %v1007 = vadd.f32 %v1005, %v1006
    %v1008 = vsel %vm979, %v975, 0.0
    %v1009 = vrot.slane %v1008, 4
    %v1010 = vadd.f32 %v1008, %v1009
    %v1011 = vrot.slane %v1010, 2
    %v1012 = vadd.f32 %v1010, %v1011
    %v1013 = vrot.slane %v1012, 1
    %v1014 = vadd.f32 %v1012, %v1013
    %v1015 = vsel %vm979, %v976, 0.0
    %v1016 = vrot.slane %v1015, 4
    %v1017 = vadd.f32 %v1015, %v1016
    %v1018 = vrot.slane %v1017, 2
    %v1019 = vadd.f32 %v1017, %v1018
    %v1020 = vrot.slane %v1019, 1
    %v1021 = vadd.f32 %v1019, %v1020
    %v1022 = vsel %vm979, %v977, 0.0
    %v1023 = vrot.slane %v1022, 4
    %v1024 = vadd.f32 %v1022, %v1023
    %v1025 = vrot.slane %v1024, 2
    %v1026 = vadd.f32 %v1024, %v1025
    %v1027 = vrot.slane %v1026, 1
    %v1028 = vadd.f32 %v1026, %v1027
    %v1029 = vsel %vm979, %v978, 0.0
    %v1030 = vrot.slane %v1029, 4
    %v1031 = vadd.f32 %v1029, %v1030
    %v1032 = vrot.slane %v1031, 2
    %v1033 = vadd.f32 %v1031, %v1032
    %v1034 = vrot.slane %v1033, 1
    %v1035 = vadd.f32 %v1033, %v1034
    %1044 = vrot.lane.b32.xlu0 %v986, 96
    %v1045 = vpop.permute.xlu0 %1044
    %1046 = vrot.lane.b32.xlu0 %v993, 96
    %v1047 = vpop.permute.xlu0 %1046
    %1048 = vrot.lane.b32.xlu0 %v1000, 96
    %v1049 = vpop.permute.xlu0 %1048
    %1050 = vrot.lane.b32.xlu0 %v1007, 96
    %v1051 = vpop.permute.xlu0 %1050
    %1052 = vrot.lane.b32.xlu0 %v1014, 96
    %v1053 = vpop.permute.xlu0 %1052
    %1054 = vrot.lane.b32.xlu0 %v1021, 96
    %v1055 = vpop.permute.xlu0 %1054
    %1056 = vrot.lane.b32.xlu0 %v1028, 96
    %v1057 = vpop.permute.xlu0 %1056
    %1058 = vrot.lane.b32.xlu0 %v1035, 96
    %v1059 = vpop.permute.xlu0 %1058
    %v1068 = vadd.f32 %v955, %v1045
    %v1069 = vadd.f32 %v956, %v1047
    %v1070 = vadd.f32 %v957, %v1049
    %v1071 = vadd.f32 %v958, %v1051
    %v1072 = vadd.f32 %v959, %v1053
    %v1073 = vadd.f32 %v960, %v1055
    %v1074 = vadd.f32 %v961, %v1057
    %v1075 = vadd.f32 %v962, %v1059
    %v1084 = vmul.f32 %v741, %v26
    %v1085 = vmul.f32 %v744, %v27
    %v1086 = vmul.f32 %v747, %v28
    %v1087 = vmul.f32 %v750, %v29
    %v1088 = vmul.f32 %v753, %v30
    %v1089 = vmul.f32 %v756, %v31
    %v1090 = vmul.f32 %v759, %v32
    %v1091 = vmul.f32 %v762, %v33
    %vm1092 = vcmask 779776
    %v1093 = vsel %vm1092, %v1084, 0.0
    %v1094 = vrot.slane %v1093, 4
    %v1095 = vadd.f32 %v1093, %v1094
    %v1096 = vrot.slane %v1095, 2
    %v1097 = vadd.f32 %v1095, %v1096
    %v1098 = vrot.slane %v1097, 1
    %v1099 = vadd.f32 %v1097, %v1098
    %v1100 = vsel %vm1092, %v1085, 0.0
    %v1101 = vrot.slane %v1100, 4
    %v1102 = vadd.f32 %v1100, %v1101
    %v1103 = vrot.slane %v1102, 2
    %v1104 = vadd.f32 %v1102, %v1103
    %v1105 = vrot.slane %v1104, 1
    %v1106 = vadd.f32 %v1104, %v1105
    %v1107 = vsel %vm1092, %v1086, 0.0
    %v1108 = vrot.slane %v1107, 4
    %v1109 = vadd.f32 %v1107, %v1108
    %v1110 = vrot.slane %v1109, 2
    %v1111 = vadd.f32 %v1109, %v1110
    %v1112 = vrot.slane %v1111, 1
    %v1113 = vadd.f32 %v1111, %v1112
    %v1114 = vsel %vm1092, %v1087, 0.0
    %v1115 = vrot.slane %v1114, 4
    %v1116 = vadd.f32 %v1114, %v1115
    %v1117 = vrot.slane %v1116, 2
    %v1118 = vadd.f32 %v1116, %v1117
    %v1119 = vrot.slane %v1118, 1
    %v1120 = vadd.f32 %v1118, %v1119
    %v1121 = vsel %vm1092, %v1088, 0.0
    %v1122 = vrot.slane %v1121, 4
    %v1123 = vadd.f32 %v1121, %v1122
    %v1124 = vrot.slane %v1123, 2
    %v1125 = vadd.f32 %v1123, %v1124
    %v1126 = vrot.slane %v1125, 1
    %v1127 = vadd.f32 %v1125, %v1126
    %v1128 = vsel %vm1092, %v1089, 0.0
    %v1129 = vrot.slane %v1128, 4
    %v1130 = vadd.f32 %v1128, %v1129
    %v1131 = vrot.slane %v1130, 2
    %v1132 = vadd.f32 %v1130, %v1131
    %v1133 = vrot.slane %v1132, 1
    %v1134 = vadd.f32 %v1132, %v1133
    %v1135 = vsel %vm1092, %v1090, 0.0
    %v1136 = vrot.slane %v1135, 4
    %v1137 = vadd.f32 %v1135, %v1136
    %v1138 = vrot.slane %v1137, 2
    %v1139 = vadd.f32 %v1137, %v1138
    %v1140 = vrot.slane %v1139, 1
    %v1141 = vadd.f32 %v1139, %v1140
    %v1142 = vsel %vm1092, %v1091, 0.0
    %v1143 = vrot.slane %v1142, 4
    %v1144 = vadd.f32 %v1142, %v1143
    %v1145 = vrot.slane %v1144, 2
    %v1146 = vadd.f32 %v1144, %v1145
    %v1147 = vrot.slane %v1146, 1
    %v1148 = vadd.f32 %v1146, %v1147
    %1157 = vrot.lane.b32.xlu0 %v1099, 64
    %v1158 = vpop.permute.xlu0 %1157
    %1159 = vrot.lane.b32.xlu0 %v1106, 64
    %v1160 = vpop.permute.xlu0 %1159
    %1161 = vrot.lane.b32.xlu0 %v1113, 64
    %v1162 = vpop.permute.xlu0 %1161
    %1163 = vrot.lane.b32.xlu0 %v1120, 64
    %v1164 = vpop.permute.xlu0 %1163
    %1165 = vrot.lane.b32.xlu0 %v1127, 64
    %v1166 = vpop.permute.xlu0 %1165
    %1167 = vrot.lane.b32.xlu0 %v1134, 64
    %v1168 = vpop.permute.xlu0 %1167
    %1169 = vrot.lane.b32.xlu0 %v1141, 64
    %v1170 = vpop.permute.xlu0 %1169
    %1171 = vrot.lane.b32.xlu0 %v1148, 64
    %v1172 = vpop.permute.xlu0 %1171
    %v1181 = vadd.f32 %v1068, %v1158
    %v1182 = vadd.f32 %v1069, %v1160
    %v1183 = vadd.f32 %v1070, %v1162
    %v1184 = vadd.f32 %v1071, %v1164
    %v1185 = vadd.f32 %v1072, %v1166
    %v1186 = vadd.f32 %v1073, %v1168
    %v1187 = vadd.f32 %v1074, %v1170
    %v1188 = vadd.f32 %v1075, %v1172
    %v1197 = vmul.f32 %v817, %v26
    %v1198 = vmul.f32 %v820, %v27
    %v1199 = vmul.f32 %v823, %v28
    %v1200 = vmul.f32 %v826, %v29
    %v1201 = vmul.f32 %v829, %v30
    %v1202 = vmul.f32 %v832, %v31
    %v1203 = vmul.f32 %v835, %v32
    %v1204 = vmul.f32 %v838, %v33
    %vm1205 = vcmask 1042176
    %v1206 = vsel %vm1205, %v1197, 0.0
    %v1207 = vrot.slane %v1206, 4
    %v1208 = vadd.f32 %v1206, %v1207
    %v1209 = vrot.slane %v1208, 2
    %v1210 = vadd.f32 %v1208, %v1209
    %v1211 = vrot.slane %v1210, 1
    %v1212 = vadd.f32 %v1210, %v1211
    %v1213 = vsel %vm1205, %v1198, 0.0
    %v1214 = vrot.slane %v1213, 4
    %v1215 = vadd.f32 %v1213, %v1214
    %v1216 = vrot.slane %v1215, 2
    %v1217 = vadd.f32 %v1215, %v1216
    %v1218 = vrot.slane %v1217, 1
    %v1219 = vadd.f32 %v1217, %v1218
    %v1220 = vsel %vm1205, %v1199, 0.0
    %v1221 = vrot.slane %v1220, 4
    %v1222 = vadd.f32 %v1220, %v1221
    %v1223 = vrot.slane %v1222, 2
    %v1224 = vadd.f32 %v1222, %v1223
    %v1225 = vrot.slane %v1224, 1
    %v1226 = vadd.f32 %v1224, %v1225
    %v1227 = vsel %vm1205, %v1200, 0.0
    %v1228 = vrot.slane %v1227, 4
    %v1229 = vadd.f32 %v1227, %v1228
    %v1230 = vrot.slane %v1229, 2
    %v1231 = vadd.f32 %v1229, %v1230
    %v1232 = vrot.slane %v1231, 1
    %v1233 = vadd.f32 %v1231, %v1232
    %v1234 = vsel %vm1205, %v1201, 0.0
    %v1235 = vrot.slane %v1234, 4
    %v1236 = vadd.f32 %v1234, %v1235
    %v1237 = vrot.slane %v1236, 2
    %v1238 = vadd.f32 %v1236, %v1237
    %v1239 = vrot.slane %v1238, 1
    %v1240 = vadd.f32 %v1238, %v1239
    %v1241 = vsel %vm1205, %v1202, 0.0
    %v1242 = vrot.slane %v1241, 4
    %v1243 = vadd.f32 %v1241, %v1242
    %v1244 = vrot.slane %v1243, 2
    %v1245 = vadd.f32 %v1243, %v1244
    %v1246 = vrot.slane %v1245, 1
    %v1247 = vadd.f32 %v1245, %v1246
    %v1248 = vsel %vm1205, %v1203, 0.0
    %v1249 = vrot.slane %v1248, 4
    %v1250 = vadd.f32 %v1248, %v1249
    %v1251 = vrot.slane %v1250, 2
    %v1252 = vadd.f32 %v1250, %v1251
    %v1253 = vrot.slane %v1252, 1
    %v1254 = vadd.f32 %v1252, %v1253
    %v1255 = vsel %vm1205, %v1204, 0.0
    %v1256 = vrot.slane %v1255, 4
    %v1257 = vadd.f32 %v1255, %v1256
    %v1258 = vrot.slane %v1257, 2
    %v1259 = vadd.f32 %v1257, %v1258
    %v1260 = vrot.slane %v1259, 1
    %v1261 = vadd.f32 %v1259, %v1260
    %1270 = vrot.lane.b32.xlu0 %v1212, 32
    %v1271 = vpop.permute.xlu0 %1270
    %1272 = vrot.lane.b32.xlu0 %v1219, 32
    %v1273 = vpop.permute.xlu0 %1272
    %1274 = vrot.lane.b32.xlu0 %v1226, 32
    %v1275 = vpop.permute.xlu0 %1274
    %1276 = vrot.lane.b32.xlu0 %v1233, 32
    %v1277 = vpop.permute.xlu0 %1276
    %1278 = vrot.lane.b32.xlu0 %v1240, 32
    %v1279 = vpop.permute.xlu0 %1278
    %1280 = vrot.lane.b32.xlu0 %v1247, 32
    %v1281 = vpop.permute.xlu0 %1280
    %1282 = vrot.lane.b32.xlu0 %v1254, 32
    %v1283 = vpop.permute.xlu0 %1282
    %1284 = vrot.lane.b32.xlu0 %v1261, 32
    %v1285 = vpop.permute.xlu0 %1284
    %v1294 = vadd.f32 %v1181, %v1271
    %v1295 = vadd.f32 %v1182, %v1273
    %v1296 = vadd.f32 %v1183, %v1275
    %v1297 = vadd.f32 %v1184, %v1277
    %v1298 = vadd.f32 %v1185, %v1279
    %v1299 = vadd.f32 %v1186, %v1281
    %v1300 = vadd.f32 %v1187, %v1283
    %v1301 = vadd.f32 %v1188, %v1285
    %v1302 = vrcp.pop %v882
    %v1304 = vrot.slane %v1302, 1
    %v1305 = vrot.slane %v1302, 2
    %v1306 = vrot.slane %v1302, 3
    %v1307 = vrot.slane %v1302, 4
    %v1308 = vrot.slane %v1302, 5
    %v1309 = vrot.slane %v1302, 6
    %v1310 = vrot.slane %v1302, 7
    %v1319 = vmul.f32 %v1294, %v1302
    %v1320 = vmul.f32 %v1295, %v1304
    %v1321 = vmul.f32 %v1296, %v1305
    %v1322 = vmul.f32 %v1297, %v1306
    %v1323 = vmul.f32 %v1298, %v1307
    %v1324 = vmul.f32 %v1299, %v1308
    %v1325 = vmul.f32 %v1300, %v1309
    %v1326 = vmul.f32 %v1301, %v1310
    %v1335 = vrot.slane %v1320, 7
    %v1336 = vsel %vm268, %v1335, %v1319
    %v1337 = vrot.slane %v1321, 6
    %v1338 = vsel %vm270, %v1337, %v1336
    %v1339 = vrot.slane %v1322, 5
    %v1340 = vsel %vm272, %v1339, %v1338
    %v1341 = vrot.slane %v1323, 4
    %v1342 = vsel %vm274, %v1341, %v1340
    %v1343 = vrot.slane %v1324, 3
    %v1344 = vsel %vm276, %v1343, %v1342
    %v1345 = vrot.slane %v1325, 2
    %v1346 = vsel %vm278, %v1345, %v1344
    %v1347 = vrot.slane %v1326, 1
    %v1348 = vsel %vm280, %v1347, %v1346
    %vm1350 = vcmask 261120
    %1351 = vst.msk [vmem:[#allocation5] sm:$0xff] %vm1350, %v1348
    // Predicated region
    $region14: #{tpu_custom_call.1} parent=1 // pred_check
      _
    $region15: #{tpu_custom_call.1} parent=1 // pred_check_branch
      %1353 = sbr.rel (0) target = $region17
    $region16: #{tpu_custom_call.1} parent=1 // pred_region
      %s1355 = ssub.s32 128, 128
      %1356 = vsyncadd [#allocation4], %s1355
      %s1358 = sshll.u32 [#allocation5], 4
      %s1359 = int_to_ptr.vmem [resolvable:$true] %s1358
      %1361 = dma.vmem_to_hbm [thread:$0]  %s1359, 128, %s2, [#allocation4]
    $region17: #{tpu_custom_call.1} parent=1 // pred_fallthru
      _
    // Predicated region
    $region18: #{tpu_custom_call.1} parent=1 // pred_check
      _
    $region19: #{tpu_custom_call.1} parent=1 // pred_check_branch
      %1363 = sbr.rel (0) target = $region21
    $region20: #{tpu_custom_call.1} parent=1 // pred_region
      %1364 = dma.done [#allocation4], 128
    $region21: #{tpu_custom_call.1} parent=1 // pred_fallthru
      _
    %1365 = vsyncpa [#allocation3], 1
    %1366 = vsyncpa [#allocation4], 1

</llo_original>
